<compile_context>
chip_gen: v6e
topology: v6e:2x2x1
jax: 0.10.0
libtpu: 0.0.40
codegen_flags: <defaults>
</compile_context>

<pallas_src>
import math
from functools import partial

import numpy as np
import jax
import jax.numpy as jnp
from jax.experimental import pallas as pl
from jax.experimental.pallas import tpu as pltpu

LANE = 128


def _round_up(x, m):
    return (x + m - 1) // m * m


# --------------------------------------------------------------------------
# Kernel
# --------------------------------------------------------------------------
def _qnet_kernel(n_layers, s_ref, w0_ref, wrest_ref, b_ref, out_ref):
    """One batch tile: (TB, state_dim) -> (TB, D) fused [q1 | q2 | pad] output."""
    x = s_ref[...]                                     # (TB, state_dim) f32
    # Layer 0 (fused Q1|Q2) in full f32: K = state_dim is tiny, so the MXU
    # cost is negligible and we keep full precision on the input projection.
    h = jnp.dot(x, w0_ref[...], preferred_element_type=jnp.float32) + b_ref[0:1, :]
    # Hidden layers + head: ReLU (VPU, f32 — safe on all generations) then
    # block-diagonal bf16 matmul (MXU) with f32 accumulation and f32 bias add.
    for l in range(1, n_layers):
        h = jnp.maximum(h, 0.0)
        h = jnp.dot(h.astype(jnp.bfloat16), wrest_ref[l - 1],
                    preferred_element_type=jnp.float32) + b_ref[l:l + 1, :]
    out_ref[...] = h.astype(out_ref.dtype)             # lane-dense 128-wide store


# --------------------------------------------------------------------------
# Parameter packing (host-side, once): fuse Q1/Q2 into a block-diagonal MLP
# --------------------------------------------------------------------------
def pack_qnet_params(q1_params, q2_params):
    """q{1,2}_params: list of (W [in,out], b [out]) per Linear layer.

    Returns (w0 f32 [state_dim, D], w_rest bf16 [max(L-1,1), D, D],
             b_all f32 [L, D], n_layers, D) where D = 128-rounded 2*max_width.
    """
    assert len(q1_params) == len(q2_params) and len(q1_params) >= 1
    L = len(q1_params)
    state_dim = q1_params[0][0].shape[0]
    out_dims = [int(w.shape[1]) for w, _ in q1_params]
    D = _round_up(2 * max(out_dims), LANE)

    w0 = np.zeros((state_dim, D), np.float32)
    w0[:, :out_dims[0]] = np.asarray(q1_params[0][0])
    w0[:, out_dims[0]:2 * out_dims[0]] = np.asarray(q2_params[0][0])

    w_rest = np.zeros((max(L - 1, 1), D, D), np.float32)
    b_all = np.zeros((L, D), np.float32)
    b_all[0, :out_dims[0]] = np.asarray(q1_params[0][1])
    b_all[0, out_dims[0]:2 * out_dims[0]] = np.asarray(q2_params[0][1])
    for l in range(1, L):
        din, dout = q1_params[l][0].shape
        w_rest[l - 1, :din, :dout] = np.asarray(q1_params[l][0])
        w_rest[l - 1, din:2 * din, dout:2 * dout] = np.asarray(q2_params[l][0])
        b_all[l, :dout] = np.asarray(q1_params[l][1])
        b_all[l, dout:2 * dout] = np.asarray(q2_params[l][1])

    return (jnp.asarray(w0, jnp.float32),          # layer 0 kept f32 (K is tiny)
            jnp.asarray(w_rest, jnp.bfloat16),
            jnp.asarray(b_all, jnp.float32),
            L, D)


# --------------------------------------------------------------------------
# Forward wrapper
# --------------------------------------------------------------------------
def q_net_forward(s, packed, action_dim, *, tile_b=1024, out_dtype=jnp.float32):
    w0, w_rest, b_all, n_layers, D = packed
    B, state_dim = s.shape

    # Batch tiling:
    #  * B <= 16: one full-batch tile (splitting buys nothing).
    #  * B  > 16: at least 2 tiles (8-aligned, capped at tile_b) so the
    #    "parallel" grid axis can shard across v7x's two TensorCores, and
    #    large batches use big tiles to amortize the ~0.35 us/step overhead.
    if B <= 16:
        TB, B_pad = B, B
    else:
        TB = min(tile_b, _round_up(-(-B // 2), 8))
        B_pad = _round_up(B, TB)
    if B_pad != B:
        s = jnp.pad(s, ((0, B_pad - B), (0, 0)))
    grid = (B_pad // TB,)
    n_rest = w_rest.shape[0]

    out = pl.pallas_call(
        partial(_qnet_kernel, n_layers),
        out_shape=jax.ShapeDtypeStruct((B_pad, D), out_dtype),
        grid=grid,
        in_specs=[
            pl.BlockSpec((TB, state_dim), lambda i: (i, 0)),       # batch-tiled input
            pl.BlockSpec((state_dim, D), lambda i: (0, 0)),        # resident weights
            pl.BlockSpec((n_rest, D, D), lambda i: (0, 0, 0)),
            pl.BlockSpec((n_layers, D), lambda i: (0, 0)),
        ],
        out_specs=pl.BlockSpec((TB, D), lambda i: (i, 0)),
        compiler_params=pltpu.CompilerParams(
            dimension_semantics=("parallel",),
            vmem_limit_bytes=32 * 1024 * 1024,   # safe cap on v5e/v6e/v7x
        ),
    )(s, w0, w_rest, b_all)

    # Fused output layout per row: [q1 (action_dim) | q2 (action_dim) | zeros].
    # One combined slice over the slab, then split the narrow result.
    q12 = out[:B, :2 * action_dim]
    q1 = q12[:, :action_dim]
    q2 = q12[:, action_dim:]
    return q1, q2


# --------------------------------------------------------------------------
# Init (matches PyTorch nn.Linear default U(-1/sqrt(fan_in), 1/sqrt(fan_in)))
# and a pure-JAX reference for correctness checking.
# --------------------------------------------------------------------------
def init_linear(key, in_dim, out_dim):
    kw, kb = jax.random.split(key)
    bound = 1.0 / math.sqrt(in_dim)
    w = jax.random.uniform(kw, (in_dim, out_dim), jnp.float32, -bound, bound)
    b = jax.random.uniform(kb, (out_dim,), jnp.float32, -bound, bound)
    return w, b


def init_qnet(key, state_dim, action_dim, hid_shape):
    layer_shape = [state_dim] + list(hid_shape) + [action_dim]
    q1, q2 = [], []
    for j in range(len(layer_shape) - 1):
        key, k1, k2 = jax.random.split(key, 3)
        q1.append(init_linear(k1, layer_shape[j], layer_shape[j + 1]))
        q2.append(init_linear(k2, layer_shape[j], layer_shape[j + 1]))
    return q1, q2


def q_net_reference(s, q1_params, q2_params):
    def mlp(x, params):
        for i, (w, b) in enumerate(params):
            x = x @ w + b
            if i < len(params) - 1:
                x = jnp.maximum(x, 0.0)
        return x
    return mlp(s, q1_params), mlp(s, q2_params)


if __name__ == "__main__":
    state_dim, action_dim, hid_shape = 8, 6, (32, 32)

    key = jax.random.PRNGKey(0)
    q1_params, q2_params = init_qnet(key, state_dim, action_dim, hid_shape)
    packed = pack_qnet_params(q1_params, q2_params)

    # Check 1: tiny batch -> single-tile path.
    key, ks = jax.random.split(key)
    s_small = jax.random.normal(ks, (2, state_dim), jnp.float32)
    q1, q2 = q_net_forward(s_small, packed, action_dim)
    jax.block_until_ready((q1, q2))
    r1, r2 = q_net_reference(s_small, q1_params, q2_params)
    assert q1.shape == r1.shape and q2.shape == r2.shape
    assert jnp.allclose(q1, r1, atol=3e-2, rtol=3e-2), "Q1 mismatch (small batch)"
    assert jnp.allclose(q2, r2, atol=3e-2, rtol=3e-2), "Q2 mismatch (small batch)"

    # Check 2: moderate batch -> multi-tile (grid >= 2, padded) path.
    key, ks = jax.random.split(key)
    s_big = jax.random.normal(ks, (40, state_dim), jnp.float32)
    q1b, q2b = q_net_forward(s_big, packed, action_dim)
    jax.block_until_ready((q1b, q2b))
    r1b, r2b = q_net_reference(s_big, q1_params, q2_params)
    assert jnp.allclose(q1b, r1b, atol=3e-2, rtol=3e-2), "Q1 mismatch (tiled batch)"
    assert jnp.allclose(q2b, r2b, atol=3e-2, rtol=3e-2), "Q2 mismatch (tiled batch)"

    print("KERNEL_OK")
</pallas_src>

<mosaic_0001>
module attributes {stable_mosaic.version = 11 : i64} {
  func.func @_qnet_kernel(%arg0: i32, %arg1: memref<2x8xf32, #tpu.memory_space<vmem>>, %arg2: memref<8x128xf32, #tpu.memory_space<vmem>>, %arg3: memref<2x128x128xbf16, #tpu.memory_space<vmem>>, %arg4: memref<3x128xf32, #tpu.memory_space<vmem>>, %arg5: memref<2x128xf32, #tpu.memory_space<vmem>>) attributes {dimension_semantics = [#tpu.dimension_semantics<parallel>], iteration_bounds = array<i64: 1>, scalar_prefetch = 0 : i64, scratch_operands = 0 : i64, tpu.core_type = #tpu.core_type<tc>, window_params = [{transform_indices = @transform_0, window_bounds = array<i64: 2, 8>}, {pipeline_mode = #tpu.pipeline_mode<synchronous>, transform_indices = @transform_1, window_bounds = array<i64: 8, 128>}, {pipeline_mode = #tpu.pipeline_mode<synchronous>, transform_indices = @transform_2, window_bounds = array<i64: 2, 128, 128>}, {pipeline_mode = #tpu.pipeline_mode<synchronous>, transform_indices = @transform_3, window_bounds = array<i64: 3, 128>}, {transform_indices = @transform_4, window_bounds = array<i64: 2, 128>}]} {
    %c0 = arith.constant 0 : index
    %c0_0 = arith.constant 0 : index
    %0 = vector.load %arg1[%c0, %c0_0] : memref<2x8xf32, #tpu.memory_space<vmem>>, vector<2x8xf32>
    %c0_1 = arith.constant 0 : index
    %c0_2 = arith.constant 0 : index
    %1 = vector.load %arg2[%c0_1, %c0_2] : memref<8x128xf32, #tpu.memory_space<vmem>>, vector<8x128xf32>
    %cst = arith.constant dense<0.000000e+00> : vector<2x128xf32>
    %2 = tpu.matmul %0, %1, %cst {dimension_numbers = #tpu.dot_dimension_numbers<[1], [0], [0], [1], [0, 0, 1, 1], [], []>} : vector<2x8xf32>, vector<8x128xf32>, vector<2x128xf32> -> vector<2x128xf32>
    %c0_3 = arith.constant 0 : index
    %c0_4 = arith.constant 0 : index
    %3 = vector.load %arg4[%c0_3, %c0_4] : memref<3x128xf32, #tpu.memory_space<vmem>>, vector<1x128xf32>
    %4 = vector.broadcast %3 : vector<1x128xf32> to vector<2x128xf32>
    %5 = arith.addf %2, %4 : vector<2x128xf32>
    %cst_5 = arith.constant 0.000000e+00 : f32
    %6 = vector.broadcast %cst_5 : f32 to vector<2x128xf32>
    %7 = arith.maximumf %5, %6 : vector<2x128xf32>
    %8 = arith.truncf %7 : vector<2x128xf32> to vector<2x128xbf16>
    %c0_6 = arith.constant 0 : index
    %c0_7 = arith.constant 0 : index
    %c0_8 = arith.constant 0 : index
    %9 = vector.load %arg3[%c0_6, %c0_7, %c0_8] : memref<2x128x128xbf16, #tpu.memory_space<vmem>>, vector<1x128x128xbf16>
    %10 = vector.shape_cast %9 : vector<1x128x128xbf16> to vector<128x128xbf16>
    %cst_9 = arith.constant dense<0.000000e+00> : vector<2x128xf32>
    %11 = tpu.matmul %8, %10, %cst_9 {dimension_numbers = #tpu.dot_dimension_numbers<[1], [0], [0], [1], [0, 0, 1, 1], [], []>} : vector<2x128xbf16>, vector<128x128xbf16>, vector<2x128xf32> -> vector<2x128xf32>
    %c1 = arith.constant 1 : index
    %c0_10 = arith.constant 0 : index
    %12 = vector.load %arg4[%c1, %c0_10] : memref<3x128xf32, #tpu.memory_space<vmem>>, vector<1x128xf32>
    %13 = vector.broadcast %12 : vector<1x128xf32> to vector<2x128xf32>
    %14 = arith.addf %11, %13 : vector<2x128xf32>
    %cst_11 = arith.constant 0.000000e+00 : f32
    %15 = vector.broadcast %cst_11 : f32 to vector<2x128xf32>
    %16 = arith.maximumf %14, %15 : vector<2x128xf32>
    %17 = arith.truncf %16 : vector<2x128xf32> to vector<2x128xbf16>
    %c1_12 = arith.constant 1 : index
    %c0_13 = arith.constant 0 : index
    %c0_14 = arith.constant 0 : index
    %18 = vector.load %arg3[%c1_12, %c0_13, %c0_14] : memref<2x128x128xbf16, #tpu.memory_space<vmem>>, vector<1x128x128xbf16>
    %19 = vector.shape_cast %18 : vector<1x128x128xbf16> to vector<128x128xbf16>
    %cst_15 = arith.constant dense<0.000000e+00> : vector<2x128xf32>
    %20 = tpu.matmul %17, %19, %cst_15 {dimension_numbers = #tpu.dot_dimension_numbers<[1], [0], [0], [1], [0, 0, 1, 1], [], []>} : vector<2x128xbf16>, vector<128x128xbf16>, vector<2x128xf32> -> vector<2x128xf32>
    %c2 = arith.constant 2 : index
    %c0_16 = arith.constant 0 : index
    %21 = vector.load %arg4[%c2, %c0_16] : memref<3x128xf32, #tpu.memory_space<vmem>>, vector<1x128xf32>
    %22 = vector.broadcast %21 : vector<1x128xf32> to vector<2x128xf32>
    %23 = arith.addf %20, %22 : vector<2x128xf32>
    %c0_17 = arith.constant 0 : index
    %c0_18 = arith.constant 0 : index
    %24 = vector.load %arg5[%c0_17, %c0_18] : memref<2x128xf32, #tpu.memory_space<vmem>>, vector<2x128xf32>
    tpu.vector_store %arg5[%c0_17, %c0_18], %23 {strides = array<i32>} : memref<2x128xf32, #tpu.memory_space<vmem>>, vector<2x128xf32>,
    return
  }
  func.func @transform_0(%arg0: i32) -> (i32, i32) {
    %c0_i32 = arith.constant 0 : i32
    %c0_i32_0 = arith.constant 0 : i32
    return %arg0, %c0_i32 : i32, i32
  }
  func.func @transform_1(%arg0: i32) -> (i32, i32) {
    %c0_i32 = arith.constant 0 : i32
    %c0_i32_0 = arith.constant 0 : i32
    %c0_i32_1 = arith.constant 0 : i32
    return %c0_i32, %c0_i32_0 : i32, i32
  }
  func.func @transform_2(%arg0: i32) -> (i32, i32, i32) {
    %c0_i32 = arith.constant 0 : i32
    %c0_i32_0 = arith.constant 0 : i32
    %c0_i32_1 = arith.constant 0 : i32
    %c0_i32_2 = arith.constant 0 : i32
    return %c0_i32, %c0_i32_0, %c0_i32_1 : i32, i32, i32
  }
  func.func @transform_3(%arg0: i32) -> (i32, i32) {
    %c0_i32 = arith.constant 0 : i32
    %c0_i32_0 = arith.constant 0 : i32
    %c0_i32_1 = arith.constant 0 : i32
    return %c0_i32, %c0_i32_0 : i32, i32
  }
  func.func @transform_4(%arg0: i32) -> (i32, i32) {
    %c0_i32 = arith.constant 0 : i32
    %c0_i32_0 = arith.constant 0 : i32
    return %arg0, %c0_i32 : i32, i32
  }
}

</mosaic_0001>

<llo_original>
// kernel: tpu_custom_call.1
$region0: #{tpu_custom_call.1}
  #allocation0 [shape = 'u32[]', space=smem, size = 0x4, offset = 0x4, fixed_abs, tag = 'smem constant byte address 0x4 - core index']
  #allocation1 [shape = 'u32[144,128]{1,0:T(1,128)}', space=vmem, size = 0x12000, scoped, tag = 'internal scratch']
  %s0 = inlined_call_operand.hbm [shape: f32[2,8], index: 0, kind: input, shape index: {}]
  %s1 = inlined_call_operand.hbm [shape: f32[8,128], index: 1, kind: input, shape index: {}]
  %s2 = inlined_call_operand.hbm [shape: bf16[2,128,128], index: 2, kind: input, shape index: {}]
  %s3 = inlined_call_operand.vmem [shape: f32[3,128], index: 3, kind: input, shape index: {}]
  %s4 = inlined_call_operand.hbm [shape: f32[2,128], index: 4, kind: output, shape index: {}]
  %s5 = sld [smem:[#allocation0]]
  $region38: #{tpu_custom_call.1} parent=0
    _
  %s7 = ssub.s32 1, %s5
  %s8 = scalar_select 0, %s7, %s5
  $region1: #{tpu_custom_call.1} parent=0
    #allocation2 [shape = 'u8[1024]{0}', space=vmem, size = 0x400, scoped, tag = 'input window, operand 0, single buffered']
    #allocation3 [shape = 's32[1]{0}', space=sflag, size = 0x4, scoped, tag = 'scoped memory for tpu_custom_call.1']
    #allocation4 [shape = 's32[1]{0}', space=sflag, size = 0x4, scoped, tag = 'scoped memory for tpu_custom_call.1']
    #allocation5 [shape = 'u8[4096]{0}', space=vmem, size = 0x1000, scoped, tag = 'input window, operand 1, single buffered']
    #allocation6 [shape = 's32[1]{0}', space=sflag, size = 0x4, scoped, tag = 'scoped memory for tpu_custom_call.1']
    #allocation7 [shape = 'u8[65536]{0}', space=vmem, size = 0x10000, scoped, tag = 'input window, operand 2, single buffered']
    #allocation8 [shape = 'u8[1024]{0}', space=vmem, size = 0x400, scoped, tag = 'output window, operand 0, single buffered']
    %9 = vsyncpa [#allocation3], 0
    %10 = vsyncpa [#allocation6], 0
    %11 = vsyncpa [#allocation4], 0
    // Predicated region
    $region2: #{tpu_custom_call.1} parent=1 // pred_check
      _
    $region3: #{tpu_custom_call.1} parent=1 // pred_check_branch
      %13 = sbr.rel (0) target = $region5
    $region4: #{tpu_custom_call.1} parent=1 // pred_region
      %s15 = ssub.s32 32, 32
      %16 = vsyncadd [#allocation3], %s15
      %s18 = sshll.u32 [#allocation2], 4
      %s19 = int_to_ptr.vmem [resolvable:$true] %s18
      %21 = dma.hbm_to_vmem [thread:$0]  %s0, 32, %s19, [#allocation3]
    $region5: #{tpu_custom_call.1} parent=1 // pred_fallthru
      _
    // Predicated region
    $region6: #{tpu_custom_call.1} parent=1 // pred_check
      _
    $region7: #{tpu_custom_call.1} parent=1 // pred_check_branch
      %23 = sbr.rel (0) target = $region9
    $region8: #{tpu_custom_call.1} parent=1 // pred_region
      %s25 = ssub.s32 128, 128
      %26 = vsyncadd [#allocation6], %s25
      %s28 = sshll.u32 [#allocation5], 4
      %s29 = int_to_ptr.vmem [resolvable:$true] %s28
      %31 = dma.hbm_to_vmem [thread:$0]  %s1, 128, %s29, [#allocation6]
    $region9: #{tpu_custom_call.1} parent=1 // pred_fallthru
      _
    // Predicated region
    $region10: #{tpu_custom_call.1} parent=1 // pred_check
      _
    $region11: #{tpu_custom_call.1} parent=1 // pred_check_branch
      %33 = sbr.rel (0) target = $region13
    $region12: #{tpu_custom_call.1} parent=1 // pred_region
      %s35 = ssub.s32 2048, 2048
      %36 = vsyncadd [#allocation6], %s35
      %s37 = sshll.u32 [#allocation7], 4
      %s38 = int_to_ptr.vmem [resolvable:$true] %s37
      %43 = dma.hbm_to_vmem [thread:$0]  %s2, 2048, %s38, [#allocation6], 64, 64, 4
    $region13: #{tpu_custom_call.1} parent=1 // pred_fallthru
      _
    // Predicated region
    $region14: #{tpu_custom_call.1} parent=1 // pred_check
      _
    $region15: #{tpu_custom_call.1} parent=1 // pred_check_branch
      %45 = sbr.rel (0) target = $region17
    $region16: #{tpu_custom_call.1} parent=1 // pred_region
      _
    $region17: #{tpu_custom_call.1} parent=1 // pred_fallthru
      _
    // Predicated region
    $region18: #{tpu_custom_call.1} parent=1 // pred_check
      _
    $region19: #{tpu_custom_call.1} parent=1 // pred_check_branch
      %47 = sbr.rel (0) target = $region21
    $region20: #{tpu_custom_call.1} parent=1 // pred_region
      %48 = dma.done [#allocation3], 32
    $region21: #{tpu_custom_call.1} parent=1 // pred_fallthru
      _
    // Predicated region
    $region22: #{tpu_custom_call.1} parent=1 // pred_check
      _
    $region23: #{tpu_custom_call.1} parent=1 // pred_check_branch
      %50 = sbr.rel (0) target = $region25
    $region24: #{tpu_custom_call.1} parent=1 // pred_region
      %51 = dma.done [#allocation6], 128
    $region25: #{tpu_custom_call.1} parent=1 // pred_fallthru
      _
    // Predicated region
    $region26: #{tpu_custom_call.1} parent=1 // pred_check
      _
    $region27: #{tpu_custom_call.1} parent=1 // pred_check_branch
      %53 = sbr.rel (0) target = $region29
    $region28: #{tpu_custom_call.1} parent=1 // pred_region
      %54 = dma.done [#allocation6], 2048
    $region29: #{tpu_custom_call.1} parent=1 // pred_fallthru
      _
    %v56 = vld [vmem:[#allocation2] sm:$0x3]
    %v57 = vld [vmem:[#allocation5] sm:$0xff]
    %v58 = vld [vmem:[%s3] sm:$0x1]
    %v59 = vlaneseq
    %v60 = vshrl.u32 %v59, 7
    %v61 = vsub.s32 0, %v60
    %v62 = vrot.slane %v58, %v61
    %vm63 = vcmask 64512
    %v65 = vsel %vm63, %v56, 0
    %67 = vmatprep.subr.mxu0 0.0
    %68 = vmatpush1.msra.mxu0 0.0
    %69 = vmatprep.subr.mxu0 0.0
    %70 = vmatpush1.msra.mxu0 0.0
    %71 = vmatprep.subr.mxu0 0.0
    %72 = vmatpush1.msra.mxu0 0.0
    %73 = vmatprep.subr.mxu0 0.0
    %74 = vmatpush1.msra.mxu0 0.0
    %75 = vmatprep.subr.mxu0 0.0
    %76 = vmatpush1.msra.mxu0 0.0
    %77 = vmatprep.subr.mxu0 0.0
    %78 = vmatpush1.msra.mxu0 0.0
    %79 = vmatprep.subr.mxu0 0.0
    %80 = vmatpush1.msra.mxu0 0.0
    %81 = vmatprep.subr.mxu0 0.0
    %82 = vmatpush1.msra.mxu0 0.0
    %83 = vmatprep.subr.mxu0 0.0
    %84 = vmatpush1.msra.mxu0 0.0
    %85 = vmatprep.subr.mxu0 0.0
    %86 = vmatpush1.msra.mxu0 0.0
    %87 = vmatprep.subr.mxu0 0.0
    %88 = vmatpush1.msra.mxu0 0.0
    %89 = vmatprep.subr.mxu0 0.0
    %90 = vmatpush1.msra.mxu0 0.0
    %91 = vmatprep.subr.mxu0 0.0
    %92 = vmatpush1.msra.mxu0 0.0
    %93 = vmatprep.subr.mxu0 0.0
    %94 = vmatpush1.msra.mxu0 0.0
    %95 = vmatprep.subr.mxu0 0.0
    %96 = vmatpush1.msra.mxu0 0.0
    %97 = vmatprep.subr.mxu0 0.0
    %98 = vmatpush1.msra.mxu0 %v57
    %99 = vmatprep.subr.mxu0 0.0
    %100 = vmatpush2.msra.mxu0 0.0
    %101 = vmatprep.subr.mxu0 0.0
    %102 = vmatpush2.msra.mxu0 0.0
    %103 = vmatprep.subr.mxu0 0.0
    %104 = vmatpush2.msra.mxu0 0.0
    %105 = vmatprep.subr.mxu0 0.0
    %106 = vmatpush2.msra.mxu0 0.0
    %107 = vmatprep.subr.mxu0 0.0
    %108 = vmatpush2.msra.mxu0 0.0
    %109 = vmatprep.subr.mxu0 0.0
    %110 = vmatpush2.msra.mxu0 0.0
    %111 = vmatprep.subr.mxu0 0.0
    %112 = vmatpush2.msra.mxu0 0.0
    %113 = vmatprep.subr.mxu0 0.0
    %114 = vmatpush2.msra.mxu0 0.0
    %115 = vmatprep.subr.mxu0 0.0
    %116 = vmatpush2.msra.mxu0 0.0
    %117 = vmatprep.subr.mxu0 0.0
    %118 = vmatpush2.msra.mxu0 0.0
    %119 = vmatprep.subr.mxu0 0.0
    %120 = vmatpush2.msra.mxu0 0.0
    %121 = vmatprep.subr.mxu0 0.0
    %122 = vmatpush2.msra.mxu0 0.0
    %123 = vmatprep.subr.mxu0 0.0
    %124 = vmatpush2.msra.mxu0 0.0
    %125 = vmatprep.subr.mxu0 0.0
    %126 = vmatpush2.msra.mxu0 0.0
    %127 = vmatprep.subr.mxu0 0.0
    %128 = vmatpush2.msra.mxu0 0.0
    %129 = vmatprep.subr.mxu0 0.0
    %130 = vmatpush2.msra.mxu0 0.0
    %131 = vmatprep.mubr.f32.mxu0 0.0
    %132 = vmatmul.mubr.f32.gmra.mxu0 %v65
    %v133 = vpop.f32.mrf.mxu0
    %v134 = vadd.f32 %v62, %v133
    %v135 = vpop.f32.mrf.mxu0
    %136 = vdwg.mxu0
    %v137 = vmax.f32 %v134, 0.0
    %v138 = vpack.c.bf16 %v137, %v137
    %v139 = vld [vmem:[#allocation7] sm:$0xf]
    %v140 = vld [vmem:[#allocation7 + $0x4] sm:$0xf]
    %v141 = vld [vmem:[#allocation7 + $0x8] sm:$0xf]
    %v142 = vld [vmem:[#allocation7 + $0xc] sm:$0xf]
    %v143 = vld [vmem:[#allocation7 + $0x10] sm:$0xf]
    %v144 = vld [vmem:[#allocation7 + $0x14] sm:$0xf]
    %v145 = vld [vmem:[#allocation7 + $0x18] sm:$0xf]
    %v146 = vld [vmem:[#allocation7 + $0x1c] sm:$0xf]
    %v147 = vld [vmem:[#allocation7 + $0x20] sm:$0xf]
    %v148 = vld [vmem:[#allocation7 + $0x24] sm:$0xf]
    %v149 = vld [vmem:[#allocation7 + $0x28] sm:$0xf]
    %v150 = vld [vmem:[#allocation7 + $0x2c] sm:$0xf]
    %v151 = vld [vmem:[#allocation7 + $0x30] sm:$0xf]
    %v152 = vld [vmem:[#allocation7 + $0x34] sm:$0xf]
    %v153 = vld [vmem:[#allocation7 + $0x38] sm:$0xf]
    %v154 = vld [vmem:[#allocation7 + $0x3c] sm:$0xf]
    %v155 = vld [vmem:[%s3 + $0x1] sm:$0x1]
    %v156 = vlaneseq
    %v157 = vshrl.u32 %v156, 7
    %v158 = vsub.s32 0, %v157
    %v159 = vrot.slane %v155, %v158
    %v176 = vunpack.c.l.b16 %v139
    %v177 = vunpack.c.l.b16 %v140
    %v178 = vunpack.c.l.b16 %v141
    %v179 = vunpack.c.l.b16 %v142
    %v180 = vunpack.c.l.b16 %v143
    %v181 = vunpack.c.l.b16 %v144
    %v182 = vunpack.c.l.b16 %v145
    %v183 = vunpack.c.l.b16 %v146
    %v184 = vunpack.c.l.b16 %v147
    %v185 = vunpack.c.l.b16 %v148
    %v186 = vunpack.c.l.b16 %v149
    %v187 = vunpack.c.l.b16 %v150
    %v188 = vunpack.c.l.b16 %v151
    %v189 = vunpack.c.l.b16 %v152
    %v190 = vunpack.c.l.b16 %v153
    %v191 = vunpack.c.l.b16 %v154
    %v192 = vpack.c.b16 %v177, %v176
    %v193 = vpack.c.b16 %v179, %v178
    %v194 = vpack.c.b16 %v181, %v180
    %v195 = vpack.c.b16 %v183, %v182
    %v196 = vpack.c.b16 %v185, %v184
    %v197 = vpack.c.b16 %v187, %v186
    %v198 = vpack.c.b16 %v189, %v188
    %v199 = vpack.c.b16 %v191, %v190
    %208 = vmatprep.subr.bf16.mxu0 0
    %209 = vmatpush1.bf16.msra.mxu0 %v199
    %210 = vmatprep.subr.bf16.mxu0 0
    %211 = vmatpush1.bf16.msra.mxu0 %v198
    %212 = vmatprep.subr.bf16.mxu0 0
    %213 = vmatpush1.bf16.msra.mxu0 %v197
    %214 = vmatprep.subr.bf16.mxu0 0
    %215 = vmatpush1.bf16.msra.mxu0 %v196
    %216 = vmatprep.subr.bf16.mxu0 0
    %217 = vmatpush1.bf16.msra.mxu0 %v195
    %218 = vmatprep.subr.bf16.mxu0 0
    %219 = vmatpush1.bf16.msra.mxu0 %v194
    %220 = vmatprep.subr.bf16.mxu0 0
    %221 = vmatpush1.bf16.msra.mxu0 %v193
    %222 = vmatprep.subr.bf16.mxu0 0
    %223 = vmatpush1.bf16.msra.mxu0 %v192
    %224 = vmatprep.subr.bf16.mxu0 0
    %225 = vmatpush2.bf16.msra.mxu0 0
    %226 = vmatprep.subr.bf16.mxu0 0
    %227 = vmatpush2.bf16.msra.mxu0 0
    %228 = vmatprep.subr.bf16.mxu0 0
    %229 = vmatpush2.bf16.msra.mxu0 0
    %230 = vmatprep.subr.bf16.mxu0 0
    %231 = vmatpush2.bf16.msra.mxu0 0
    %232 = vmatprep.subr.bf16.mxu0 0
    %233 = vmatpush2.bf16.msra.mxu0 0
    %234 = vmatprep.subr.bf16.mxu0 0
    %235 = vmatpush2.bf16.msra.mxu0 0
    %236 = vmatprep.subr.bf16.mxu0 0
    %237 = vmatpush2.bf16.msra.mxu0 0
    %238 = vmatprep.subr.bf16.mxu0 0
    %239 = vmatpush2.bf16.msra.mxu0 0
    %240 = vmatprep.mubr.bf16.mxu0 0
    %241 = vmatmul.mubr.bf16.gmra.mxu0 %v138
    %v242 = vpop.f32.mrf.mxu0
    %v243 = vadd.f32 %v159, %v242
    %v244 = vpop.f32.mrf.mxu0
    %v245 = vpop.f32.mrf.mxu0
    %v246 = vpop.f32.mrf.mxu0
    %247 = vdwg.mxu0
    %v248 = vmax.f32 %v243, 0.0
    %v249 = vpack.c.bf16 %v248, %v248
    %s250 = scalar_lea.vmem [#allocation7], 64
    %v251 = vld [vmem:[%s250] sm:$0xf]
    %v252 = vld [vmem:[%s250 + $0x4] sm:$0xf]
    %v253 = vld [vmem:[%s250 + $0x8] sm:$0xf]
    %v254 = vld [vmem:[%s250 + $0xc] sm:$0xf]
    %v255 = vld [vmem:[%s250 + $0x10] sm:$0xf]
    %v256 = vld [vmem:[%s250 + $0x14] sm:$0xf]
    %v257 = vld [vmem:[%s250 + $0x18] sm:$0xf]
    %v258 = vld [vmem:[%s250 + $0x1c] sm:$0xf]
    %v259 = vld [vmem:[%s250 + $0x20] sm:$0xf]
    %v260 = vld [vmem:[%s250 + $0x24] sm:$0xf]
    %v261 = vld [vmem:[%s250 + $0x28] sm:$0xf]
    %v262 = vld [vmem:[%s250 + $0x2c] sm:$0xf]
    %v263 = vld [vmem:[%s250 + $0x30] sm:$0xf]
    %v264 = vld [vmem:[%s250 + $0x34] sm:$0xf]
    %v265 = vld [vmem:[%s250 + $0x38] sm:$0xf]
    %v266 = vld [vmem:[%s250 + $0x3c] sm:$0xf]
    %v267 = vld [vmem:[%s3 + $0x2] sm:$0x1]
    %v268 = vlaneseq
    %v269 = vshrl.u32 %v268, 7
    %v270 = vsub.s32 0, %v269
    %v271 = vrot.slane %v267, %v270
    %v288 = vunpack.c.l.b16 %v251
    %v289 = vunpack.c.l.b16 %v252
    %v290 = vunpack.c.l.b16 %v253
    %v291 = vunpack.c.l.b16 %v254
    %v292 = vunpack.c.l.b16 %v255
    %v293 = vunpack.c.l.b16 %v256
    %v294 = vunpack.c.l.b16 %v257
    %v295 = vunpack.c.l.b16 %v258
    %v296 = vunpack.c.l.b16 %v259
    %v297 = vunpack.c.l.b16 %v260
    %v298 = vunpack.c.l.b16 %v261
    %v299 = vunpack.c.l.b16 %v262
    %v300 = vunpack.c.l.b16 %v263
    %v301 = vunpack.c.l.b16 %v264
    %v302 = vunpack.c.l.b16 %v265
    %v303 = vunpack.c.l.b16 %v266
    %v304 = vpack.c.b16 %v289, %v288
    %v305 = vpack.c.b16 %v291, %v290
    %v306 = vpack.c.b16 %v293, %v292
    %v307 = vpack.c.b16 %v295, %v294
    %v308 = vpack.c.b16 %v297, %v296
    %v309 = vpack.c.b16 %v299, %v298
    %v310 = vpack.c.b16 %v301, %v300
    %v311 = vpack.c.b16 %v303, %v302
    %320 = vmatprep.subr.bf16.mxu0 0
    %321 = vmatpush1.bf16.msra.mxu0 %v311
    %322 = vmatprep.subr.bf16.mxu0 0
    %323 = vmatpush1.bf16.msra.mxu0 %v310
    %324 = vmatprep.subr.bf16.mxu0 0
    %325 = vmatpush1.bf16.msra.mxu0 %v309
    %326 = vmatprep.subr.bf16.mxu0 0
    %327 = vmatpush1.bf16.msra.mxu0 %v308
    %328 = vmatprep.subr.bf16.mxu0 0
    %329 = vmatpush1.bf16.msra.mxu0 %v307
    %330 = vmatprep.subr.bf16.mxu0 0
    %331 = vmatpush1.bf16.msra.mxu0 %v306
    %332 = vmatprep.subr.bf16.mxu0 0
    %333 = vmatpush1.bf16.msra.mxu0 %v305
    %334 = vmatprep.subr.bf16.mxu0 0
    %335 = vmatpush1.bf16.msra.mxu0 %v304
    %336 = vmatprep.subr.bf16.mxu0 0
    %337 = vmatpush2.bf16.msra.mxu0 0
    %338 = vmatprep.subr.bf16.mxu0 0
    %339 = vmatpush2.bf16.msra.mxu0 0
    %340 = vmatprep.subr.bf16.mxu0 0
    %341 = vmatpush2.bf16.msra.mxu0 0
    %342 = vmatprep.subr.bf16.mxu0 0
    %343 = vmatpush2.bf16.msra.mxu0 0
    %344 = vmatprep.subr.bf16.mxu0 0
    %345 = vmatpush2.bf16.msra.mxu0 0
    %346 = vmatprep.subr.bf16.mxu0 0
    %347 = vmatpush2.bf16.msra.mxu0 0
    %348 = vmatprep.subr.bf16.mxu0 0
    %349 = vmatpush2.bf16.msra.mxu0 0
    %350 = vmatprep.subr.bf16.mxu0 0
    %351 = vmatpush2.bf16.msra.mxu0 0
    %352 = vmatprep.mubr.bf16.mxu0 0
    %353 = vmatmul.mubr.bf16.gmra.mxu0 %v249
    %v354 = vpop.f32.mrf.mxu0
    %v355 = vadd.f32 %v271, %v354
    %v356 = vpop.f32.mrf.mxu0
    %v357 = vpop.f32.mrf.mxu0
    %v358 = vpop.f32.mrf.mxu0
    %359 = vdwg.mxu0
    %360 = vst [vmem:[#allocation8] sm:$0x3] %v355
    // Predicated region
    $region30: #{tpu_custom_call.1} parent=1 // pred_check
      _
    $region31: #{tpu_custom_call.1} parent=1 // pred_check_branch
      %362 = sbr.rel (0) target = $region33
    $region32: #{tpu_custom_call.1} parent=1 // pred_region
      %s364 = ssub.s32 32, 32
      %365 = vsyncadd [#allocation4], %s364
      %s367 = sshll.u32 [#allocation8], 4
      %s368 = int_to_ptr.vmem [resolvable:$true] %s367
      %370 = dma.vmem_to_hbm [thread:$0]  %s368, 32, %s4, [#allocation4]
    $region33: #{tpu_custom_call.1} parent=1 // pred_fallthru
      _
    // Predicated region
    $region34: #{tpu_custom_call.1} parent=1 // pred_check
      _
    $region35: #{tpu_custom_call.1} parent=1 // pred_check_branch
      %372 = sbr.rel (0) target = $region37
    $region36: #{tpu_custom_call.1} parent=1 // pred_region
      %373 = dma.done [#allocation4], 32
    $region37: #{tpu_custom_call.1} parent=1 // pred_fallthru
      _
    %374 = vsyncpa [#allocation3], 1
    %375 = vsyncpa [#allocation6], 1
    %376 = vsyncpa [#allocation4], 1

</llo_original>
